<compile_context>
chip_gen: v5e
topology: v5e:2x2
jax: 0.10.0
libtpu: 0.0.40
codegen_flags: <defaults>
</compile_context>

<pallas_src>
import functools
from math import floor

import numpy as np

import jax
import jax.numpy as jnp
from jax import lax
from jax.experimental import pallas as pl
from jax.experimental.pallas import tpu as pltpu


# ----------------------- module config (PyTorch defaults) -----------------------
FILTER_DIM = 2
FILTER_SCALE = 2
STD = 1e-4            # penalty gaussian std
# reduction = 'sum', store_filters = False


# ----------------------------- plain-JAX front end ------------------------------
def _filter_shape(input_shape):
    """AWLoss.get_filter_shape for filter_dim=2."""
    _, nc, h, w = input_shape
    fs = [nc, FILTER_SCALE * h, FILTER_SCALE * w]
    return [s - 1 if s % 2 == 0 else s for s in fs]


def _pad_signal(x, shape):
    """AWLoss.pad_signal for 4-D x, faithful to torch (incl. the reorder quirk:
    W receives the H pad amounts, H receives the W pad amounts, and negative
    pads crop — e.g. channels are cropped from 4 -> 3)."""
    pads = []
    for i in range(3):
        p1 = floor((shape[i] - x.shape[i + 1]) / 2)
        p2 = shape[i] - x.shape[i + 1] - p1
        pads.extend((p1, p2))
    cfg = [
        (0, 0, 0),                    # batch
        (pads[0], pads[1], 0),        # C  <- channel amounts
        (pads[4], pads[5], 0),        # H  <- width amounts  (torch quirk)
        (pads[2], pads[3], 0),        # W  <- height amounts (torch quirk)
    ]
    return lax.pad(x, jnp.zeros((), x.dtype), cfg)


def _make_penalty_np(shape):
    """AWLoss.make_penalty: normalized isotropic gaussian on [-1,1]^k grid.
    Computed in numpy (static shape + static std) so it folds to a constant."""
    axes = [np.linspace(-1.0, 1.0, n, dtype=np.float64) for n in shape]
    mesh = np.stack(np.meshgrid(*axes, indexing="ij"), axis=-1)
    var = float(STD) ** 2
    k = len(shape)
    logp = (-0.5 * np.sum(mesh * mesh, axis=-1) / var
            - 0.5 * k * np.log(2.0 * np.pi * var))
    # exp(logp) / max(exp(logp))  (rv > 0, identical to torch's rv/abs(rv).max())
    return np.exp(logp - np.max(logp)).astype(np.float32)


def _wiener_filter_fft(x, y, fs, prwh):
    """AWLoss.wienerfft (frequency-domain Wiener deconvolution), minus the final
    roll.  Returns the un-rolled filter and the roll shifts torch would apply."""
    dims = (-2, -1)
    xf_flip = jnp.fft.fftn(jnp.flip(x, axis=dims), axes=dims)
    fccorr = xf_flip * jnp.fft.fftn(y, axes=dims)
    facorr = xf_flip * jnp.fft.fftn(x, axes=dims)
    fdconv = fccorr / (facorr + jnp.max(jnp.abs(facorr)) * prwh)
    s = tuple(int(n) for n in fs[-FILTER_DIM:])
    fdconv = fdconv[..., : s[-1] // 2 + 1]          # explicit Hermitian crop
    rolled = jnp.fft.irfftn(fdconv, s=s, axes=dims).astype(jnp.float32)
    shifts = tuple(int(-n / 2) - 1 for n in x.shape[1:])[-FILTER_DIM:]
    return rolled, shifts


# --------------------------------- Pallas kernel ---------------------------------
def _awloss_tail_kernel(v_ref, t_ref, o_ref, vsq_acc, tv_acc, *,
                        n_elem, lane_tile, tsq):
    """Grid (rows, lane_tiles).  Accumulate per-row ||v||^2 and <t,v> across the
    lane axis, finalize the expanded row loss at the last lane tile.

    v_ref : (BR, LT) f32  lane tile of the flattened filter maps
    t_ref : (1,  LT) f32  matching lane tile of the (pre-rolled) penalty
    o_ref : (BR, 128) f32 0.5*sqrt(||t||^2 - 2<t,v>/||v|| + 1), lane-broadcast
    vsq_acc, tv_acc : (BR, 1) f32 VMEM accumulators
    """
    k = pl.program_id(1)

    @pl.when(k == 0)
    def _():
        vsq_acc[...] = jnp.zeros_like(vsq_acc)
        tv_acc[...] = jnp.zeros_like(tv_acc)

    v = v_ref[...]                       # (BR, LT)
    t = t_ref[...]                       # (1,  LT) -> broadcasts over rows

    # Mask the ragged last lane tile (edge-block OOB contents are unspecified).
    col = k * lane_tile + lax.broadcasted_iota(jnp.int32, v.shape, 1)
    lane_ok = col < n_elem

    vsq_acc[...] += jnp.sum(jnp.where(lane_ok, v * v, 0.0), axis=1, keepdims=True)
    tv_acc[...] += jnp.sum(jnp.where(lane_ok, t * v, 0.0), axis=1, keepdims=True)

    @pl.when(k == pl.num_programs(1) - 1)
    def _():
        vsq = vsq_acc[...]
        tv = tv_acc[...]
        # Guard all-zero maps (torch would NaN; real maps always have vsq > 0).
        inv_norm = lax.rsqrt(jnp.where(vsq > 0.0, vsq, 1.0))      # EUP rsqrt
        # Expanded form; clamp radicand at 0 against catastrophic cancellation.
        rad = jnp.maximum(tsq - 2.0 * tv * inv_norm + 1.0, 0.0)
        f = 0.5 * jnp.sqrt(rad)                                   # (BR, 1)
        o_ref[...] = jnp.broadcast_to(f, o_ref.shape)


def _choose_tiles(n_maps, n_elem, *, target_buf_bytes=2 << 20):
    """Pick (block_rows, lane_tile): v buffer ~<= target_buf_bytes (fits every
    generation's VMEM with double-buffering), rows a multiple of 8, lanes a
    multiple of 128, and >=2 row blocks when possible for v7x megacore."""
    lanes = 128
    total_lane_blocks = pl.cdiv(n_elem, lanes)

    rows8 = pl.cdiv(n_maps, 8) * 8
    if rows8 >= 16:
        block_rows = min(256, max(8, (rows8 // 2 // 8) * 8))   # >= 2 row blocks
    else:
        block_rows = 8

    max_lane_blocks = max(1, target_buf_bytes // (block_rows * lanes * 4))
    lane_blocks = min(int(total_lane_blocks), int(max_lane_blocks))
    return int(block_rows), int(lane_blocks) * lanes


def _awloss_tail(v_maps, t_adj_np, *, target_buf_bytes=2 << 20):
    """loss = sum_r 0.5 * || t - v_maps[r] / ||v_maps[r]|| ||_F  (Pallas)."""
    n_maps, n_elem = v_maps.shape
    block_rows, lane_tile = _choose_tiles(n_maps, n_elem,
                                          target_buf_bytes=target_buf_bytes)

    grid_rows = pl.cdiv(n_maps, block_rows)
    grid_lanes = pl.cdiv(n_elem, lane_tile)
    rows_out = grid_rows * block_rows        # full output blocks (tiny array)

    # ||t||^2 is a compile-time constant (penalty depends only on static shape).
    tsq = float(np.sum(t_adj_np.astype(np.float64) ** 2))
    t_flat = jnp.asarray(t_adj_np.reshape(1, -1), dtype=jnp.float32)

    kernel = functools.partial(_awloss_tail_kernel,
                               n_elem=int(n_elem), lane_tile=int(lane_tile),
                               tsq=tsq)

    v_blk_bytes = block_rows * lane_tile * 4
    vmem_limit = int(min(64 << 20, max(32 << 20, 8 * v_blk_bytes)))

    out = pl.pallas_call(
        kernel,
        out_shape=jax.ShapeDtypeStruct((rows_out, 128), jnp.float32),
        grid_spec=pltpu.PrefetchScalarGridSpec(
            num_scalar_prefetch=0,
            grid=(grid_rows, grid_lanes),          # rows (parallel), lanes last
            in_specs=[
                pl.BlockSpec((block_rows, lane_tile), lambda i, k: (i, k)),
                pl.BlockSpec((1, lane_tile), lambda i, k: (0, k)),
            ],
            out_specs=pl.BlockSpec((block_rows, 128), lambda i, k: (i, 0)),
            scratch_shapes=[
                pltpu.VMEM((block_rows, 1), jnp.float32),   # ||v||^2 acc
                pltpu.VMEM((block_rows, 1), jnp.float32),   # <t,v>  acc
            ],
        ),
        compiler_params=pltpu.CompilerParams(
            dimension_semantics=("parallel", "arbitrary"),
            vmem_limit_bytes=vmem_limit),
    )(v_maps.astype(jnp.float32), t_flat)

    # Tiny final reduce over the valid per-map partials (lane 0 of each row).
    return jnp.sum(out[:n_maps, 0])


def _awloss_tail_jnp(v_maps, t_flat):
    """Plain-jnp tail for tiny problems (pallas launch + pipeline overhead would
    dominate; the FFT front end dwarfs it anyway)."""
    t = t_flat.reshape(1, -1)
    vnorm = jnp.sqrt(jnp.sum(v_maps * v_maps, axis=1, keepdims=True))
    d = t - v_maps / vnorm
    return jnp.sum(0.5 * jnp.sqrt(jnp.sum(d * d, axis=1)))


# ---------------------------------- forward pass ----------------------------------
def awloss_forward(recon, target, epsilon=0.0, use_pallas=None):
    """AWLoss.forward(recon, target, epsilon) with the module defaults."""
    assert recon.shape == target.shape
    recon = recon.astype(jnp.float32)
    target = target.astype(jnp.float32)

    fs = _filter_shape(recon.shape)
    recon_p = _pad_signal(recon, fs)
    target_p = _pad_signal(target, fs)

    # torch: v = wienerfft(target, recon, fs, epsilon); then roll by `shifts`.
    v_unrolled, shifts = _wiener_filter_fft(target_p, recon_p, fs, epsilon)

    # Fold torch.roll(v, s) into the constant penalty:
    #   || T - roll(v, s) ||  ==  || roll(T, -s) - v ||   (exact permutation),
    # and ||v|| is roll-invariant, so the filter tensor needs no extra pass.
    t = _make_penalty_np(fs[-FILTER_DIM:])
    t_adj = np.roll(t, tuple(-s for s in shifts), axis=(0, 1))

    bc = v_unrolled.shape[0] * v_unrolled.shape[1]
    v_maps = v_unrolled.reshape(bc, -1)
    n_maps, n_elem = v_maps.shape

    if use_pallas is None:
        # Size gate: below ~1 MiB of filter data the plain-jnp tail is cheaper.
        use_pallas = (n_maps * n_elem * 4) >= (1 << 20)

    if use_pallas:
        loss = _awloss_tail(v_maps, t_adj)
    else:
        loss = _awloss_tail_jnp(v_maps, jnp.asarray(t_adj))

    # reduction == 'sum' (module default); 'mean' would divide by batch size.
    return loss


# ------------------------------ pure-JAX reference ------------------------------
def awloss_reference(recon, target, epsilon=0.0):
    """Literal transcription of the torch tail (explicit roll + expand)."""
    recon = recon.astype(jnp.float32)
    target = target.astype(jnp.float32)
    fs = _filter_shape(recon.shape)
    recon_p = _pad_signal(recon, fs)
    target_p = _pad_signal(target, fs)
    rolled, shifts = _wiener_filter_fft(target_p, recon_p, fs, epsilon)
    v = jnp.roll(rolled, shifts, axis=(-2, -1))
    vnorm = jnp.sqrt(jnp.sum(v * v, axis=(-2, -1)))[..., None, None]
    v = v / vnorm
    big_t = jnp.asarray(_make_penalty_np(fs[-FILTER_DIM:]))[None, None]
    f = 0.5 * jnp.sqrt(jnp.sum((big_t - v) ** 2, axis=(-2, -1)))
    return jnp.sum(f)


if __name__ == "__main__":
    key = jax.random.PRNGKey(0)
    k1, k2 = jax.random.split(key)

    # Small shapes consistent with the module: NCHW, batch=2, channels=4, 16x16.
    shape = (2, 4, 16, 16)
    target = jax.random.normal(k1, shape, dtype=jnp.float32)
    recon = target + 0.1 * jax.random.normal(k2, shape, dtype=jnp.float32)

    # Pass a small whitening epsilon through forward's `epsilon` argument
    # (module default self.epsilon=0.0 makes the spectral division ill-posed).
    eps = 1e-9

    # Force the Pallas path so the kernel is exercised even at demo size
    # (the auto size-gate would route this tiny problem to plain jnp).
    loss = awloss_forward(recon, target, epsilon=eps, use_pallas=True)
    loss = jax.block_until_ready(loss)

    ref = awloss_reference(recon, target, epsilon=eps)
    assert bool(jnp.isfinite(loss)), loss
    # rtol relaxed slightly vs the direct-form reference: the kernel evaluates
    # the expanded single-pass form ||t||^2 - 2<t,v>/||v|| + 1 in f32, which
    # rounds differently from the literal ||t - v/||v|| || reduction.
    assert jnp.allclose(loss, ref, rtol=1e-3, atol=1e-5), (loss, ref)

    print("KERNEL_OK")
</pallas_src>

<mosaic_0001>
module attributes {stable_mosaic.version = 11 : i64} {
  func.func @_awloss_tail_kernel(%arg0: i32, %arg1: i32, %arg2: memref<8x1024xf32, #tpu.memory_space<vmem>>, %arg3: memref<1x1024xf32, #tpu.memory_space<vmem>>, %arg4: memref<8x128xf32, #tpu.memory_space<vmem>>, %arg5: memref<8x1xf32, #tpu.memory_space<vmem>>, %arg6: memref<8x1xf32, #tpu.memory_space<vmem>>) attributes {dimension_semantics = [#tpu.dimension_semantics<parallel>, #tpu.dimension_semantics<arbitrary>], iteration_bounds = array<i64: 1, 1>, scalar_prefetch = 0 : i64, scratch_operands = 2 : i64, tpu.core_type = #tpu.core_type<tc>, window_params = [{transform_indices = @transform_0, window_bounds = array<i64: 8, 1024>}, {transform_indices = @transform_1, window_bounds = array<i64: 1, 1024>}, {transform_indices = @transform_2, window_bounds = array<i64: 8, 128>}]} {
    %c0_i32 = arith.constant 0 : i32
    %0 = arith.cmpi eq, %arg1, %c0_i32 : i32
    %1 = arith.extui %0 : i1 to i32
    %c0_i32_0 = arith.constant 0 : i32
    %2 = arith.cmpi ne, %1, %c0_i32_0 : i32
    scf.if %2 {
      %cst_17 = arith.constant 0.000000e+00 : f32
      %31 = vector.broadcast %cst_17 : f32 to vector<8x1xf32>
      %c0_18 = arith.constant 0 : index
      %c0_19 = arith.constant 0 : index
      %32 = vector.load %arg5[%c0_18, %c0_19] : memref<8x1xf32, #tpu.memory_space<vmem>>, vector<8x1xf32>
      tpu.vector_store %arg5[%c0_18, %c0_19], %31 {strides = array<i32>} : memref<8x1xf32, #tpu.memory_space<vmem>>, vector<8x1xf32>,
      %cst_20 = arith.constant 0.000000e+00 : f32
      %33 = vector.broadcast %cst_20 : f32 to vector<8x1xf32>
      %c0_21 = arith.constant 0 : index
      %c0_22 = arith.constant 0 : index
      %34 = vector.load %arg6[%c0_21, %c0_22] : memref<8x1xf32, #tpu.memory_space<vmem>>, vector<8x1xf32>
      tpu.vector_store %arg6[%c0_21, %c0_22], %33 {strides = array<i32>} : memref<8x1xf32, #tpu.memory_space<vmem>>, vector<8x1xf32>,
    } else {
    }
    %c0 = arith.constant 0 : index
    %c0_1 = arith.constant 0 : index
    %3 = vector.load %arg2[%c0, %c0_1] : memref<8x1024xf32, #tpu.memory_space<vmem>>, vector<8x1024xf32>
    %c0_2 = arith.constant 0 : index
    %c0_3 = arith.constant 0 : index
    %4 = vector.load %arg3[%c0_2, %c0_3] : memref<1x1024xf32, #tpu.memory_space<vmem>>, vector<1x1024xf32>
    %c1024_i32 = arith.constant 1024 : i32
    %5 = arith.muli %arg1, %c1024_i32 : i32
    %6 = tpu.iota {dimensions = array<i32: 1>} : vector<8x1024xi32>
    %7 = vector.broadcast %5 : i32 to vector<8x1024xi32>
    %8 = arith.addi %7, %6 : vector<8x1024xi32>
    %c961_i32 = arith.constant 961 : i32
    %9 = vector.broadcast %c961_i32 : i32 to vector<8x1024xi32>
    %10 = arith.cmpi slt, %8, %9 : vector<8x1024xi32>
    %c0_4 = arith.constant 0 : index
    %c0_5 = arith.constant 0 : index
    %11 = vector.load %arg5[%c0_4, %c0_5] : memref<8x1xf32, #tpu.memory_space<vmem>>, vector<8x1xf32>
    %12 = arith.mulf %3, %3 : vector<8x1024xf32>
    %cst = arith.constant 0.000000e+00 : f32
    %13 = vector.broadcast %cst : f32 to vector<8x1024xf32>
    %14 = arith.select %10, %12, %13 : vector<8x1024xi1>, vector<8x1024xf32>
    %cst_6 = arith.constant dense<0.000000e+00> : vector<8xf32>
    %15 = vector.multi_reduction <add>, %14, %cst_6 [1] : vector<8x1024xf32> to vector<8xf32>
    %16 = vector.shape_cast %15 : vector<8xf32> to vector<8x1xf32>
    %17 = arith.addf %11, %16 : vector<8x1xf32>
    %c0_7 = arith.constant 0 : index
    %c0_8 = arith.constant 0 : index
    %18 = vector.load %arg5[%c0_7, %c0_8] : memref<8x1xf32, #tpu.memory_space<vmem>>, vector<8x1xf32>
    tpu.vector_store %arg5[%c0_7, %c0_8], %17 {strides = array<i32>} : memref<8x1xf32, #tpu.memory_space<vmem>>, vector<8x1xf32>,
    %c0_9 = arith.constant 0 : index
    %c0_10 = arith.constant 0 : index
    %19 = vector.load %arg6[%c0_9, %c0_10] : memref<8x1xf32, #tpu.memory_space<vmem>>, vector<8x1xf32>
    %20 = vector.broadcast %4 : vector<1x1024xf32> to vector<8x1024xf32>
    %21 = arith.mulf %20, %3 : vector<8x1024xf32>
    %cst_11 = arith.constant 0.000000e+00 : f32
    %22 = vector.broadcast %cst_11 : f32 to vector<8x1024xf32>
    %23 = arith.select %10, %21, %22 : vector<8x1024xi1>, vector<8x1024xf32>
    %cst_12 = arith.constant dense<0.000000e+00> : vector<8xf32>
    %24 = vector.multi_reduction <add>, %23, %cst_12 [1] : vector<8x1024xf32> to vector<8xf32>
    %25 = vector.shape_cast %24 : vector<8xf32> to vector<8x1xf32>
    %26 = arith.addf %19, %25 : vector<8x1xf32>
    %c0_13 = arith.constant 0 : index
    %c0_14 = arith.constant 0 : index
    %27 = vector.load %arg6[%c0_13, %c0_14] : memref<8x1xf32, #tpu.memory_space<vmem>>, vector<8x1xf32>
    tpu.vector_store %arg6[%c0_13, %c0_14], %26 {strides = array<i32>} : memref<8x1xf32, #tpu.memory_space<vmem>>, vector<8x1xf32>,
    %c0_i32_15 = arith.constant 0 : i32
    %28 = arith.cmpi eq, %arg1, %c0_i32_15 : i32
    %29 = arith.extui %28 : i1 to i32
    %c0_i32_16 = arith.constant 0 : i32
    %30 = arith.cmpi ne, %29, %c0_i32_16 : i32
    scf.if %30 {
      %c0_17 = arith.constant 0 : index
      %c0_18 = arith.constant 0 : index
      %31 = vector.load %arg5[%c0_17, %c0_18] : memref<8x1xf32, #tpu.memory_space<vmem>>, vector<8x1xf32>
      %c0_19 = arith.constant 0 : index
      %c0_20 = arith.constant 0 : index
      %32 = vector.load %arg6[%c0_19, %c0_20] : memref<8x1xf32, #tpu.memory_space<vmem>>, vector<8x1xf32>
      %cst_21 = arith.constant 0.000000e+00 : f32
      %33 = vector.broadcast %cst_21 : f32 to vector<8x1xf32>
      %34 = arith.cmpf ogt, %31, %33 : vector<8x1xf32>
      %cst_22 = arith.constant 1.000000e+00 : f32
      %35 = vector.broadcast %cst_22 : f32 to vector<8x1xf32>
      %36 = arith.select %34, %31, %35 : vector<8x1xi1>, vector<8x1xf32>
      %37 = math.rsqrt %36 : vector<8x1xf32>
      %cst_23 = arith.constant 2.000000e+00 : f32
      %38 = vector.broadcast %cst_23 : f32 to vector<8x1xf32>
      %39 = arith.mulf %38, %32 : vector<8x1xf32>
      %40 = arith.mulf %39, %37 : vector<8x1xf32>
      %cst_24 = arith.constant 1.000000e+00 : f32
      %41 = vector.broadcast %cst_24 : f32 to vector<8x1xf32>
      %42 = arith.subf %41, %40 : vector<8x1xf32>
      %cst_25 = arith.constant 1.000000e+00 : f32
      %43 = vector.broadcast %cst_25 : f32 to vector<8x1xf32>
      %44 = arith.addf %42, %43 : vector<8x1xf32>
      %cst_26 = arith.constant 0.000000e+00 : f32
      %45 = vector.broadcast %cst_26 : f32 to vector<8x1xf32>
      %46 = arith.maximumf %44, %45 : vector<8x1xf32>
      %47 = math.sqrt %46 : vector<8x1xf32>
      %cst_27 = arith.constant 5.000000e-01 : f32
      %48 = vector.broadcast %cst_27 : f32 to vector<8x1xf32>
      %49 = arith.mulf %48, %47 : vector<8x1xf32>
      %50 = vector.shape_cast %49 : vector<8x1xf32> to vector<8x1xf32>
      %51 = vector.broadcast %50 : vector<8x1xf32> to vector<8x128xf32>
      %c0_28 = arith.constant 0 : index
      %c0_29 = arith.constant 0 : index
      %52 = vector.load %arg4[%c0_28, %c0_29] : memref<8x128xf32, #tpu.memory_space<vmem>>, vector<8x128xf32>
      tpu.vector_store %arg4[%c0_28, %c0_29], %51 {strides = array<i32>} : memref<8x128xf32, #tpu.memory_space<vmem>>, vector<8x128xf32>,
    } else {
    }
    return
  }
  func.func @transform_0(%arg0: i32, %arg1: i32) -> (i32, i32) {
    %c0_i32 = arith.constant 0 : i32
    return %arg0, %arg1 : i32, i32
  }
  func.func @transform_1(%arg0: i32, %arg1: i32) -> (i32, i32) {
    %c0_i32 = arith.constant 0 : i32
    %c0_i32_0 = arith.constant 0 : i32
    return %c0_i32, %arg1 : i32, i32
  }
  func.func @transform_2(%arg0: i32, %arg1: i32) -> (i32, i32) {
    %c0_i32 = arith.constant 0 : i32
    %c0_i32_0 = arith.constant 0 : i32
    return %arg0, %c0_i32 : i32, i32
  }
}

</mosaic_0001>

<llo_original>
// kernel: tpu_custom_call.1
$region0: #{tpu_custom_call.1}
  #allocation0 [shape = 'u32[]', space=smem, size = 0x4, offset = 0x4, fixed_abs, tag = 'smem constant byte address 0x4 - core index']
  #allocation1 [shape = 'u32[72,128]{1,0:T(1,128)}', space=vmem, size = 0x9000, scoped, tag = 'internal scratch']
  #allocation2 [shape = 'f32[8,1]{1,0:T(8,128)}', space=vmem, size = 0x1000, scoped, tag = 'scratch operand']
  #allocation3 [shape = 'f32[8,1]{1,0:T(8,128)}', space=vmem, size = 0x1000, scoped, tag = 'scratch operand']
  %s0 = inlined_call_operand.hbm [shape: f32[6,961], index: 0, kind: input, shape index: {}]
  %s1 = inlined_call_operand.hbm [shape: f32[1,961], index: 1, kind: input, shape index: {}]
  %s2 = inlined_call_operand.hbm [shape: f32[8,128], index: 2, kind: output, shape index: {}]
  %s3 = sld [smem:[#allocation0]]
  $region34: #{tpu_custom_call.1} parent=0
    _
  %s5 = ssub.s32 1, %s3
  %s6 = scalar_select 0, %s5, %s3
  $region1: #{tpu_custom_call.1} parent=0
    #allocation4 [shape = 'u8[32768]{0}', space=vmem, size = 0x8000, scoped, tag = 'input window, operand 0, single buffered']
    #allocation5 [shape = 's32[1]{0}', space=sflag, size = 0x4, scoped, tag = 'scoped memory for tpu_custom_call.1']
    #allocation6 [shape = 's32[1]{0}', space=sflag, size = 0x4, scoped, tag = 'scoped memory for tpu_custom_call.1']
    #allocation7 [shape = 'u8[4096]{0}', space=vmem, size = 0x1000, scoped, tag = 'input window, operand 1, single buffered']
    #allocation8 [shape = 's32[1]{0}', space=sflag, size = 0x4, scoped, tag = 'scoped memory for tpu_custom_call.1']
    #allocation9 [shape = 'u8[4096]{0}', space=vmem, size = 0x1000, scoped, tag = 'output window, operand 0, single buffered']
    %7 = vsyncpa [#allocation5], 0
    %8 = vsyncpa [#allocation8], 0
    %9 = vsyncpa [#allocation6], 0
    // Predicated region
    $region2: #{tpu_custom_call.1} parent=1 // pred_check
      _
    $region3: #{tpu_custom_call.1} parent=1 // pred_check_branch
      %11 = sbr.rel (0) target = $region5
    $region4: #{tpu_custom_call.1} parent=1 // pred_region
      %13 = vsyncadd [#allocation5], 0
      %s15 = sshll.u32 %s0, 4
      %s16 = int_to_ptr.hbm [resolvable:$true] %s15
      %s17 = sshll.u32 [#allocation4], 4
      %s18 = int_to_ptr.vmem [resolvable:$true] %s17
      %20 = dma.hbm_to_vmem [thread:$0]  %s16, 1024, %s18, [#allocation5]
    $region5: #{tpu_custom_call.1} parent=1 // pred_fallthru
      _
    // Predicated region
    $region6: #{tpu_custom_call.1} parent=1 // pred_check
      _
    $region7: #{tpu_custom_call.1} parent=1 // pred_check_branch
      %22 = sbr.rel (0) target = $region9
    $region8: #{tpu_custom_call.1} parent=1 // pred_region
      %24 = vsyncadd [#allocation8], 0
      %s26 = sshll.u32 %s1, 4
      %s27 = int_to_ptr.hbm [resolvable:$true] %s26
      %s28 = sshll.u32 [#allocation7], 4
      %s29 = int_to_ptr.vmem [resolvable:$true] %s28
      %31 = dma.hbm_to_vmem [thread:$0]  %s27, 128, %s29, [#allocation8]
    $region9: #{tpu_custom_call.1} parent=1 // pred_fallthru
      _
    // Predicated region
    $region10: #{tpu_custom_call.1} parent=1 // pred_check
      _
    $region11: #{tpu_custom_call.1} parent=1 // pred_check_branch
      %33 = sbr.rel (0) target = $region13
    $region12: #{tpu_custom_call.1} parent=1 // pred_region
      %35 = dma.done [#allocation5], 1024
    $region13: #{tpu_custom_call.1} parent=1 // pred_fallthru
      _
    // Predicated region
    $region14: #{tpu_custom_call.1} parent=1 // pred_check
      _
    $region15: #{tpu_custom_call.1} parent=1 // pred_check_branch
      %37 = sbr.rel (0) target = $region17
    $region16: #{tpu_custom_call.1} parent=1 // pred_region
      %39 = dma.done [#allocation8], 128
    $region17: #{tpu_custom_call.1} parent=1 // pred_fallthru
      _
    %p40 = scmp.eq.s32.totalorder 0, 0
    // Predicated region
    $region18: #{tpu_custom_call.1} parent=1 // pred_check
      %p41 = pneg %p40
    $region19: #{tpu_custom_call.1} parent=1 // pred_check_branch
      %43 = sbr.rel (%p41) target = $region21
    $region20: #{tpu_custom_call.1} parent=1 // pred_region
      %vm44 = vcmask 7168
      %45 = vst.msk [vmem:[#allocation2] sm:$0xff] %vm44, 0.0
      %46 = vst.msk [vmem:[#allocation3] sm:$0xff] %vm44, 0.0
    $region21: #{tpu_custom_call.1} parent=1 // pred_fallthru
      _
    %v47 = vld [vmem:[#allocation4] sm:$0xff]
    %v48 = vld [vmem:[#allocation4 + $0x8] sm:$0xff]
    %v49 = vld [vmem:[#allocation4 + $0x10] sm:$0xff]
    %v50 = vld [vmem:[#allocation4 + $0x18] sm:$0xff]
    %v51 = vld [vmem:[#allocation4 + $0x20] sm:$0xff]
    %v52 = vld [vmem:[#allocation4 + $0x28] sm:$0xff]
    %v53 = vld [vmem:[#allocation4 + $0x30] sm:$0xff]
    %v54 = vld [vmem:[#allocation4 + $0x38] sm:$0xff]
    %v55 = vld [vmem:[#allocation7] sm:$0xff]
    %s56 = smul.u32 0, 1024
    %v57 = vlaneseq
    %v58 = vand.u32 %v57, 127
    %v59 = vadd.s32 %v58, 128
    %v60 = vadd.s32 %v58, 256
    %v61 = vadd.s32 %v58, 384
    %v62 = vadd.s32 %v58, 512
    %v63 = vadd.s32 %v58, 640
    %v64 = vadd.s32 %v58, 768
    %v65 = vadd.s32 %v58, 896
    %v66 = vstv %s56
    %v67 = vadd.s32 %v66, %v58
    %v68 = vadd.s32 %v66, %v59
    %v69 = vadd.s32 %v66, %v60
    %v70 = vadd.s32 %v66, %v61
    %v71 = vadd.s32 %v66, %v62
    %v72 = vadd.s32 %v66, %v63
    %v73 = vadd.s32 %v66, %v64
    %v74 = vadd.s32 %v66, %v65
    %vm75 = vcmp.lt.s32.totalorder %v67, 961
    %vm76 = vcmp.lt.s32.totalorder %v68, 961
    %vm77 = vcmp.lt.s32.totalorder %v69, 961
    %vm78 = vcmp.lt.s32.totalorder %v70, 961
    %vm79 = vcmp.lt.s32.totalorder %v71, 961
    %vm80 = vcmp.lt.s32.totalorder %v72, 961
    %vm81 = vcmp.lt.s32.totalorder %v73, 961
    %vm82 = vcmp.lt.s32.totalorder %v74, 961
    %v83 = vld [vmem:[#allocation2] sm:$0xff]
    %v84 = vmul.f32 %v47, %v47
    %v85 = vmul.f32 %v48, %v48
    %v86 = vmul.f32 %v49, %v49
    %v87 = vmul.f32 %v50, %v50
    %v88 = vmul.f32 %v51, %v51
    %v89 = vmul.f32 %v52, %v52
    %v90 = vmul.f32 %v53, %v53
    %v91 = vmul.f32 %v54, %v54
    %v92 = vsel %vm75, %v84, 0.0
    %v93 = vsel %vm76, %v85, 0.0
    %v94 = vsel %vm77, %v86, 0.0
    %v95 = vsel %vm78, %v87, 0.0
    %v96 = vsel %vm79, %v88, 0.0
    %v97 = vsel %vm80, %v89, 0.0
    %v98 = vsel %vm81, %v90, 0.0
    %v99 = vsel %vm82, %v91, 0.0
    %v100 = vadd.f32 %v92, %v93
    %v101 = vadd.f32 %v100, %v94
    %v102 = vadd.f32 %v101, %v95
    %v103 = vadd.f32 %v102, %v96
    %v104 = vadd.f32 %v103, %v97
    %v105 = vadd.f32 %v104, %v98
    %v106 = vadd.f32 %v105, %v99
    %107 = vadd.xlane.f32.xlu0 %v106
    %v108 = vpop.xlane.xlu0 %107
    %v109 = vadd.f32 %v83, %v108
    %vm110 = vcmask 7168
    %111 = vst.msk [vmem:[#allocation2] sm:$0xff] %vm110, %v109
    %v112 = vld [vmem:[#allocation3] sm:$0xff]
    %v114 = vperm.slane %v55, 0
    %v115 = vperm.slane %v55, 1
    %v116 = vperm.slane %v55, 2
    %v117 = vperm.slane %v55, 3
    %v118 = vperm.slane %v55, 4
    %v119 = vperm.slane %v55, 5
    %v120 = vperm.slane %v55, 6
    %v121 = vperm.slane %v55, 7
    %v130 = vmul.f32 %v114, %v47
    %v131 = vmul.f32 %v115, %v48
    %v132 = vmul.f32 %v116, %v49
    %v133 = vmul.f32 %v117, %v50
    %v134 = vmul.f32 %v118, %v51
    %v135 = vmul.f32 %v119, %v52
    %v136 = vmul.f32 %v120, %v53
    %v137 = vmul.f32 %v121, %v54
    %v138 = vsel %vm75, %v130, 0.0
    %v139 = vsel %vm76, %v131, 0.0
    %v140 = vsel %vm77, %v132, 0.0
    %v141 = vsel %vm78, %v133, 0.0
    %v142 = vsel %vm79, %v134, 0.0
    %v143 = vsel %vm80, %v135, 0.0
    %v144 = vsel %vm81, %v136, 0.0
    %v145 = vsel %vm82, %v137, 0.0
    %v146 = vadd.f32 %v138, %v139
    %v147 = vadd.f32 %v146, %v140
    %v148 = vadd.f32 %v147, %v141
    %v149 = vadd.f32 %v148, %v142
    %v150 = vadd.f32 %v149, %v143
    %v151 = vadd.f32 %v150, %v144
    %v152 = vadd.f32 %v151, %v145
    %153 = vadd.xlane.f32.xlu0 %v152
    %v154 = vpop.xlane.xlu0 %153
    %v155 = vadd.f32 %v112, %v154
    %156 = vst.msk [vmem:[#allocation3] sm:$0xff] %vm110, %v155
    // Predicated region
    $region22: #{tpu_custom_call.1} parent=1 // pred_check
      %p157 = pneg %p40
    $region23: #{tpu_custom_call.1} parent=1 // pred_check_branch
      %159 = sbr.rel (%p157) target = $region25
    $region24: #{tpu_custom_call.1} parent=1 // pred_region
      %v160 = vld [vmem:[#allocation2] sm:$0xff]
      %v161 = vld [vmem:[#allocation3] sm:$0xff]
      %vm162 = vcmp.gt.f32.partialorder %v160, 0.0
      %v163 = vsel %vm162, %v160, 1.0
      %v164 = vrsqrt.pop %v163
      %v165 = vmul.f32 %v164, %v163
      %v166 = vmul.f32 %v165, %v164
      %v167 = vmul.f32 0.5, %v166
      %v168 = vsub.f32 1.5, %v167
      %v169 = vmul.f32 %v164, %v168
      %vm170 = vweird.f32 %v163
      %vm171 = vweird.f32 %v164
      %vm172 = vmor %vm170, %vm171
      %v173 = vsel %vm172, %v164, %v169
      %v174 = vmul.f32 %v161, 2.0
      %v175 = vmul.f32 %v174, %v173
      %v176 = vsub.f32 1.0, %v175
      %v177 = vadd.f32 %v176, 1.0
      %v178 = vmax.f32 %v177, 0.0
      %v179 = vrsqrt.pop %v178
      %v180 = vmul.f32 %v179, %v178
      %v181 = vmul.f32 %v180, %v179
      %v182 = vmul.f32 0.5, %v181
      %v183 = vsub.f32 1.5, %v182
      %v184 = vmul.f32 %v179, %v183
      %v185 = vmul.f32 %v178, %v184
      %vm186 = vcmp.eq.f32.partialorder %v178, inf
      %v187 = vsel %vm186, %v178, %v185
      %vm188 = vcmp.eq.f32.partialorder %v178, 0.0
      %v189 = vand.u32 %v178, 2147483648
      %v190 = vsel %vm188, %v189, %v187
      %v191 = vmul.f32 %v190, 0.5
      %193 = vset.pattern.permute.xlu0 0
      %194 = vperm.xlu0 %193, %v191
      %v195 = vpop.permute.xlu0 %194
      %197 = vst [vmem:[#allocation9] sm:$0xff] %v195
    $region25: #{tpu_custom_call.1} parent=1 // pred_fallthru
      _
    // Predicated region
    $region26: #{tpu_custom_call.1} parent=1 // pred_check
      _
    $region27: #{tpu_custom_call.1} parent=1 // pred_check_branch
      %199 = sbr.rel (0) target = $region29
    $region28: #{tpu_custom_call.1} parent=1 // pred_region
      %201 = vsyncadd [#allocation6], 0
      %s203 = sshll.u32 [#allocation9], 4
      %s204 = int_to_ptr.vmem [resolvable:$true] %s203
      %s205 = sshll.u32 %s2, 4
      %s206 = int_to_ptr.hbm [resolvable:$true] %s205
      %208 = dma.vmem_to_hbm [thread:$0]  %s204, 128, %s206, [#allocation6]
    $region29: #{tpu_custom_call.1} parent=1 // pred_fallthru
      _
    // Predicated region
    $region30: #{tpu_custom_call.1} parent=1 // pred_check
      _
    $region31: #{tpu_custom_call.1} parent=1 // pred_check_branch
      %210 = sbr.rel (0) target = $region33
    $region32: #{tpu_custom_call.1} parent=1 // pred_region
      %212 = dma.done [#allocation6], 128
    $region33: #{tpu_custom_call.1} parent=1 // pred_fallthru
      _
    %213 = vsyncpa [#allocation5], 1
    %214 = vsyncpa [#allocation8], 1
    %215 = vsyncpa [#allocation6], 1

</llo_original>
